<compile_context>
chip_gen: v6e
topology: v6e:2x2x1
jax: 0.10.0
libtpu: 0.0.40
codegen_flags: <defaults>
</compile_context>

<pallas_src>
import functools

import jax
import jax.numpy as jnp
from jax.experimental import pallas as pl
from jax.experimental.pallas import tpu as pltpu


_VMEM_LIMIT = 32 * 1024 * 1024  # explicit, fits v5e/v6e/v7x scoped VMEM


def _pick_block_cols(r, target):
    """Largest divisor of r that is a multiple of 128 and <= target (else r)."""
    if r <= target or r % 128 != 0:
        return r
    best = r
    for d in range(128, min(target, r - 1) + 1, 128):
        if r % d == 0:
            best = d
    return best


# ----------------------------------------------------------------------------
# Kernels
# ----------------------------------------------------------------------------
def _conv_stats_kernel(a_ref, p_ref, y_ref, psum_ref, pssq_ref):
    # a_ref   : (Cout, Kp)   bf16  weight matrix (constant block, stays resident)
    # p_ref   : (Kp, T)      bf16  im2col patch tile
    # y_ref   : (Cout, T)    f32   conv output tile (lane-dense store)
    # psum_ref/pssq_ref : (1, Cout, 1) f32  per-tile partial BN statistics
    acc = jnp.dot(a_ref[...], p_ref[...], preferred_element_type=jnp.float32)
    y_ref[...] = acc
    psum_ref[0] = jnp.sum(acc, axis=1, keepdims=True)
    pssq_ref[0] = jnp.sum(acc * acc, axis=1, keepdims=True)


def _bn_relu_kernel(y_ref, psum_ref, pssq_ref, gamma_ref, beta_ref, o_ref, *,
                    count, eps):
    # y_ref : (Cout, T) f32 ; psum/pssq : (nt, Cout, 1) f32 (all tiles, tiny)
    # gamma/beta : (Cout, 1) f32 ; o_ref : (Cout, T) f32
    inv_n = 1.0 / count
    mean = jnp.sum(psum_ref[...], axis=0) * inv_n                 # (Cout, 1)
    var = jnp.sum(pssq_ref[...], axis=0) * inv_n - mean * mean    # biased var
    scale = gamma_ref[...] * jax.lax.rsqrt(var + eps)             # (Cout, 1)
    shift = beta_ref[...] - mean * scale
    o_ref[...] = jnp.maximum(y_ref[...] * scale + shift, 0.0)


def _maxpool_kernel(t_ref, o_ref):
    # t_ref : (k*k, C, T) ; o_ref : (C, T).  Reduce tap-by-tap from the ref so
    # only ~2 (C, T) tiles are live in vregs at a time.
    m = t_ref[0]
    for t in range(1, t_ref.shape[0]):
        m = jnp.maximum(m, t_ref[t])
    o_ref[...] = m


# ----------------------------------------------------------------------------
# Wrappers
# ----------------------------------------------------------------------------
def _im2col(x_cnhw, kh, kw, stride, pad):
    """(C, N, H, W) -> patch matrix (kh*kw*C, N*Ho*Wo), plus (Ho, Wo)."""
    C, N, H, W = x_cnhw.shape
    Ho = (H + 2 * pad - kh) // stride + 1
    Wo = (W + 2 * pad - kw) // stride + 1
    if kh == 1 and kw == 1 and stride == 1 and pad == 0:
        return x_cnhw.reshape(C, N * H * W), Ho, Wo
    xp = jnp.pad(x_cnhw, ((0, 0), (0, 0), (pad, pad), (pad, pad)))
    taps = []
    for dy in range(kh):
        for dx in range(kw):
            taps.append(
                xp[:, :, dy:dy + (Ho - 1) * stride + 1:stride,
                         dx:dx + (Wo - 1) * stride + 1:stride])
    p = jnp.stack(taps, axis=0)            # (kh*kw, C, N, Ho, Wo)
    return p.reshape(kh * kw * C, N * Ho * Wo), Ho, Wo


def conv_bn_relu(x_cnhw, weight_oihw, gamma, beta, *, stride=1, eps=1e-5,
                 block_cols=1024):
    """Conv2d(bias=False) + BatchNorm2d (training-mode batch stats) + ReLU.

    x_cnhw: (Cin, N, H, W) f32 channel-major activations.
    Returns (Cout, N, Ho, Wo) f32.
    """
    Cin, N, H, W = x_cnhw.shape
    Cout, Cin_w, kH, kW = weight_oihw.shape
    assert Cin == Cin_w
    pad = kH // 2  # 'same' padding for the odd kernels used by this module

    # ---- XLA-side glue: im2col patches + flattened weights, cast to bf16 ----
    patches, Ho, Wo = _im2col(x_cnhw, kH, kW, stride, pad)
    K = kH * kW * Cin
    R = N * Ho * Wo
    a_mat = jnp.transpose(weight_oihw, (0, 2, 3, 1)).reshape(Cout, K)
    Kp = ((K + 15) // 16) * 16          # pad contraction dim (bf16 packing)
    if Kp != K:
        patches = jnp.pad(patches, ((0, Kp - K), (0, 0)))
        a_mat = jnp.pad(a_mat, ((0, 0), (0, Kp - K)))
    patches = patches.astype(jnp.bfloat16)
    a_mat = a_mat.astype(jnp.bfloat16)

    T = _pick_block_cols(R, block_cols)
    nt = R // T

    # ---- pass 1: fused conv GEMM + per-tile partial BN statistics -----------
    y, psum, pssq = pl.pallas_call(
        _conv_stats_kernel,
        out_shape=(
            jax.ShapeDtypeStruct((Cout, R), jnp.float32),
            jax.ShapeDtypeStruct((nt, Cout, 1), jnp.float32),
            jax.ShapeDtypeStruct((nt, Cout, 1), jnp.float32),
        ),
        grid=(nt,),
        in_specs=[
            pl.BlockSpec((Cout, Kp), lambda i: (0, 0)),   # weights (resident)
            pl.BlockSpec((Kp, T), lambda i: (0, i)),      # patch tile
        ],
        out_specs=(
            pl.BlockSpec((Cout, T), lambda i: (0, i)),
            pl.BlockSpec((1, Cout, 1), lambda i: (i, 0, 0)),
            pl.BlockSpec((1, Cout, 1), lambda i: (i, 0, 0)),
        ),
        compiler_params=pltpu.CompilerParams(
            dimension_semantics=("parallel",),
            vmem_limit_bytes=_VMEM_LIMIT),
    )(a_mat, patches)

    # ---- pass 2: batch-stat BN + affine + ReLU (lane-dense elementwise) -----
    kernel2 = functools.partial(_bn_relu_kernel, count=float(R), eps=float(eps))
    out = pl.pallas_call(
        kernel2,
        out_shape=jax.ShapeDtypeStruct((Cout, R), jnp.float32),
        grid=(nt,),
        in_specs=[
            pl.BlockSpec((Cout, T), lambda i: (0, i)),
            pl.BlockSpec((nt, Cout, 1), lambda i: (0, 0, 0)),
            pl.BlockSpec((nt, Cout, 1), lambda i: (0, 0, 0)),
            pl.BlockSpec((Cout, 1), lambda i: (0, 0)),
            pl.BlockSpec((Cout, 1), lambda i: (0, 0)),
        ],
        out_specs=pl.BlockSpec((Cout, T), lambda i: (0, i)),
        compiler_params=pltpu.CompilerParams(
            dimension_semantics=("parallel",),
            vmem_limit_bytes=_VMEM_LIMIT),
    )(y, psum, pssq,
      gamma.reshape(Cout, 1).astype(jnp.float32),
      beta.reshape(Cout, 1).astype(jnp.float32))

    # TODO(synk): running_mean/running_var momentum updates are a training-time
    # side effect that does not change the forward output; not materialized.
    return out.reshape(Cout, N, Ho, Wo)


def max_pool_3x3_s2(x_cnhw, *, block_cols=1024):
    """MaxPool2d(kernel_size=3, stride=2, padding=1) in (C, N, H, W) layout."""
    C, N, H, W = x_cnhw.shape
    k, stride, pad = 3, 2, 1
    Ho = (H + 2 * pad - k) // stride + 1
    Wo = (W + 2 * pad - k) // stride + 1
    xp = jnp.pad(x_cnhw, ((0, 0), (0, 0), (pad, pad), (pad, pad)),
                 constant_values=-jnp.inf)
    taps = []
    for dy in range(k):
        for dx in range(k):
            taps.append(
                xp[:, :, dy:dy + (Ho - 1) * stride + 1:stride,
                         dx:dx + (Wo - 1) * stride + 1:stride])
    t = jnp.stack(taps, axis=0).reshape(k * k, C, N * Ho * Wo)
    R = N * Ho * Wo
    T = _pick_block_cols(R, block_cols)
    nt = R // T
    out = pl.pallas_call(
        _maxpool_kernel,
        out_shape=jax.ShapeDtypeStruct((C, R), x_cnhw.dtype),
        grid=(nt,),
        in_specs=[pl.BlockSpec((k * k, C, T), lambda i: (0, 0, i))],
        out_specs=pl.BlockSpec((C, T), lambda i: (0, i)),
        compiler_params=pltpu.CompilerParams(
            dimension_semantics=("parallel",),
            vmem_limit_bytes=_VMEM_LIMIT),
    )(t)
    return out.reshape(C, N, Ho, Wo)


def stem_block(x_nchw, params, *, block_cols=1024):
    """StemBlock forward: (N, 3, H, W) -> (N, 16, H//4, W//4)."""
    x = jnp.transpose(x_nchw, (1, 0, 2, 3))                     # -> (C, N, H, W)
    feat = conv_bn_relu(x, *params["conv"], stride=2, block_cols=block_cols)
    left = conv_bn_relu(feat, *params["left0"], stride=1, block_cols=block_cols)
    left = conv_bn_relu(left, *params["left1"], stride=2, block_cols=block_cols)
    right = max_pool_3x3_s2(feat, block_cols=block_cols)
    fused = jnp.concatenate([left, right], axis=0)              # channel concat
    out = conv_bn_relu(fused, *params["fuse"], stride=1, block_cols=block_cols)
    return jnp.transpose(out, (1, 0, 2, 3))                     # back to NCHW


# ----------------------------------------------------------------------------
# Pure-JAX reference (PyTorch semantics, f32 HIGHEST precision)
# ----------------------------------------------------------------------------
def _ref_conv_bn_relu(x, w, gamma, beta, stride, eps=1e-5):
    pad = w.shape[2] // 2
    out = jax.lax.conv_general_dilated(
        x, w, (stride, stride), [(pad, pad), (pad, pad)],
        dimension_numbers=("NCHW", "OIHW", "NCHW"),
        precision=jax.lax.Precision.HIGHEST)
    mean = out.mean(axis=(0, 2, 3), keepdims=True)
    var = ((out - mean) ** 2).mean(axis=(0, 2, 3), keepdims=True)
    y = (out - mean) * jax.lax.rsqrt(var + eps)
    y = y * gamma.reshape(1, -1, 1, 1) + beta.reshape(1, -1, 1, 1)
    return jnp.maximum(y, 0.0)


def reference_stem_block(x, params):
    feat = _ref_conv_bn_relu(x, *params["conv"], 2)
    left = _ref_conv_bn_relu(feat, *params["left0"], 1)
    left = _ref_conv_bn_relu(left, *params["left1"], 2)
    right = jax.lax.reduce_window(
        feat, -jnp.inf, jax.lax.max, (1, 1, 3, 3), (1, 1, 2, 2),
        [(0, 0), (0, 0), (1, 1), (1, 1)])
    cat = jnp.concatenate([left, right], axis=1)
    return _ref_conv_bn_relu(cat, *params["fuse"], 1)


if __name__ == "__main__":
    N, Cin, H, W = 2, 3, 32, 32
    key = jax.random.PRNGKey(0)
    ks = jax.random.split(key, 13)
    x = jax.random.normal(ks[0], (N, Cin, H, W), dtype=jnp.float32)

    def cbr_params(kw_, kg_, kb_, cout, cin, k):
        fan_in = float(cin * k * k)
        w = jax.random.normal(kw_, (cout, cin, k, k), jnp.float32) / fan_in ** 0.5
        g = 0.5 + jax.random.uniform(kg_, (cout,), jnp.float32)
        b = 0.1 * jax.random.normal(kb_, (cout,), jnp.float32)
        return (w, g, b)

    params = {
        "conv":  cbr_params(ks[1], ks[2], ks[3], 16, 3, 3),
        "left0": cbr_params(ks[4], ks[5], ks[6], 8, 16, 1),
        "left1": cbr_params(ks[7], ks[8], ks[9], 16, 8, 3),
        "fuse":  cbr_params(ks[10], ks[11], ks[12], 16, 32, 3),
    }

    # block_cols=256 keeps a multi-tile ("parallel") grid even at these toy
    # sizes so the pipelined / per-tile-partial-stats path is exercised; the
    # default (1024) is sized for realistic stem shapes.
    out = stem_block(x, params, block_cols=256)
    out = jax.block_until_ready(out)

    ref = reference_stem_block(x, params)
    assert out.shape == (N, 16, H // 4, W // 4), out.shape
    max_err = float(jnp.max(jnp.abs(out - ref)))
    # bf16 MXU operands => allow bf16-level deviation from the f32 reference.
    assert jnp.allclose(out, ref, atol=5e-2, rtol=5e-2), f"max abs err {max_err}"
    print("KERNEL_OK")
</pallas_src>

<mosaic_0001>
module attributes {stable_mosaic.version = 11 : i64} {
  func.func @_conv_stats_kernel(%arg0: i32, %arg1: memref<16x32xbf16, #tpu.memory_space<vmem>>, %arg2: memref<32x256xbf16, #tpu.memory_space<vmem>>, %arg3: memref<16x256xf32, #tpu.memory_space<vmem>>, %arg4: memref<1x16x1xf32, #tpu.memory_space<vmem>>, %arg5: memref<1x16x1xf32, #tpu.memory_space<vmem>>) attributes {dimension_semantics = [#tpu.dimension_semantics<parallel>], iteration_bounds = array<i64: 2>, scalar_prefetch = 0 : i64, scratch_operands = 0 : i64, tpu.core_type = #tpu.core_type<tc>, window_params = [{pipeline_mode = #tpu.pipeline_mode<synchronous>, transform_indices = @transform_0, window_bounds = array<i64: 16, 32>}, {transform_indices = @transform_1, window_bounds = array<i64: 32, 256>}, {transform_indices = @transform_2, window_bounds = array<i64: 16, 256>}, {transform_indices = @transform_3, window_bounds = array<i64: 1, 16, 1>}, {transform_indices = @transform_4, window_bounds = array<i64: 1, 16, 1>}]} {
    %c0 = arith.constant 0 : index
    %c0_0 = arith.constant 0 : index
    %0 = vector.load %arg1[%c0, %c0_0] : memref<16x32xbf16, #tpu.memory_space<vmem>>, vector<16x32xbf16>
    %c0_1 = arith.constant 0 : index
    %c0_2 = arith.constant 0 : index
    %1 = vector.load %arg2[%c0_1, %c0_2] : memref<32x256xbf16, #tpu.memory_space<vmem>>, vector<32x256xbf16>
    %cst = arith.constant dense<0.000000e+00> : vector<16x256xf32>
    %2 = tpu.matmul %0, %1, %cst {dimension_numbers = #tpu.dot_dimension_numbers<[1], [0], [0], [1], [0, 0, 1, 1], [], []>} : vector<16x32xbf16>, vector<32x256xbf16>, vector<16x256xf32> -> vector<16x256xf32>
    %c0_3 = arith.constant 0 : index
    %c0_4 = arith.constant 0 : index
    %3 = vector.load %arg3[%c0_3, %c0_4] : memref<16x256xf32, #tpu.memory_space<vmem>>, vector<16x256xf32>
    tpu.vector_store %arg3[%c0_3, %c0_4], %2 {strides = array<i32>} : memref<16x256xf32, #tpu.memory_space<vmem>>, vector<16x256xf32>,
    %cst_5 = arith.constant dense<0.000000e+00> : vector<16xf32>
    %4 = vector.multi_reduction <add>, %2, %cst_5 [1] : vector<16x256xf32> to vector<16xf32>
    %5 = vector.shape_cast %4 : vector<16xf32> to vector<16x1xf32>
    %c0_6 = arith.constant 0 : index
    %c0_7 = arith.constant 0 : index
    %c0_8 = arith.constant 0 : index
    %6 = vector.load %arg4[%c0_6, %c0_7, %c0_8] : memref<1x16x1xf32, #tpu.memory_space<vmem>>, vector<1x16x1xf32>
    %7 = vector.shape_cast %6 : vector<1x16x1xf32> to vector<16x1xf32>
    %8 = vector.shape_cast %5 : vector<16x1xf32> to vector<1x16x1xf32>
    tpu.vector_store %arg4[%c0_6, %c0_7, %c0_8], %8 {strides = array<i32>} : memref<1x16x1xf32, #tpu.memory_space<vmem>>, vector<1x16x1xf32>,
    %9 = arith.mulf %2, %2 : vector<16x256xf32>
    %cst_9 = arith.constant dense<0.000000e+00> : vector<16xf32>
    %10 = vector.multi_reduction <add>, %9, %cst_9 [1] : vector<16x256xf32> to vector<16xf32>
    %11 = vector.shape_cast %10 : vector<16xf32> to vector<16x1xf32>
    %c0_10 = arith.constant 0 : index
    %c0_11 = arith.constant 0 : index
    %c0_12 = arith.constant 0 : index
    %12 = vector.load %arg5[%c0_10, %c0_11, %c0_12] : memref<1x16x1xf32, #tpu.memory_space<vmem>>, vector<1x16x1xf32>
    %13 = vector.shape_cast %12 : vector<1x16x1xf32> to vector<16x1xf32>
    %14 = vector.shape_cast %11 : vector<16x1xf32> to vector<1x16x1xf32>
    tpu.vector_store %arg5[%c0_10, %c0_11, %c0_12], %14 {strides = array<i32>} : memref<1x16x1xf32, #tpu.memory_space<vmem>>, vector<1x16x1xf32>,
    return
  }
  func.func @transform_0(%arg0: i32) -> (i32, i32) {
    %c0_i32 = arith.constant 0 : i32
    %c0_i32_0 = arith.constant 0 : i32
    %c0_i32_1 = arith.constant 0 : i32
    return %c0_i32, %c0_i32_0 : i32, i32
  }
  func.func @transform_1(%arg0: i32) -> (i32, i32) {
    %c0_i32 = arith.constant 0 : i32
    %c0_i32_0 = arith.constant 0 : i32
    return %c0_i32, %arg0 : i32, i32
  }
  func.func @transform_2(%arg0: i32) -> (i32, i32) {
    %c0_i32 = arith.constant 0 : i32
    %c0_i32_0 = arith.constant 0 : i32
    return %c0_i32, %arg0 : i32, i32
  }
  func.func @transform_3(%arg0: i32) -> (i32, i32, i32) {
    %c0_i32 = arith.constant 0 : i32
    %c0_i32_0 = arith.constant 0 : i32
    %c0_i32_1 = arith.constant 0 : i32
    return %arg0, %c0_i32, %c0_i32_0 : i32, i32, i32
  }
  func.func @transform_4(%arg0: i32) -> (i32, i32, i32) {
    %c0_i32 = arith.constant 0 : i32
    %c0_i32_0 = arith.constant 0 : i32
    %c0_i32_1 = arith.constant 0 : i32
    return %arg0, %c0_i32, %c0_i32_0 : i32, i32, i32
  }
}

</mosaic_0001>

<llo_original>
// kernel: tpu_custom_call.1
$region0: #{tpu_custom_call.1}
  #allocation0 [shape = 'u32[]', space=smem, size = 0x4, offset = 0x4, fixed_abs, tag = 'smem constant byte address 0x4 - core index']
  #allocation1 [shape = 'u32[144,128]{1,0:T(1,128)}', space=vmem, size = 0x12000, scoped, tag = 'internal scratch']
  %s0 = inlined_call_operand.hbm [shape: bf16[16,32], index: 0, kind: input, shape index: {}]
  %s1 = inlined_call_operand.hbm [shape: bf16[32,512], index: 1, kind: input, shape index: {}]
  %s2 = inlined_call_operand.hbm [shape: f32[16,512], index: 2, kind: output, shape index: {0}]
  %s3 = inlined_call_operand.vmem [shape: f32[2,16,1], index: 3, kind: output, shape index: {1}]
  %s4 = inlined_call_operand.vmem [shape: f32[2,16,1], index: 4, kind: output, shape index: {2}]
  %5 = xla_tuple %s2, %s3, %s4
  %s6 = sld [smem:[#allocation0]]
  $region65: #{tpu_custom_call.1} parent=0
    _
  %s8 = ssub.s32 1, %s6
  %s9 = scalar_select 0, %s8, %s6
  $region1: #{tpu_custom_call.1} parent=0
    #allocation2 [shape = 'u8[4096]{0}', space=vmem, size = 0x1000, scoped, tag = 'input window, operand 0, single buffered']
    #allocation3 [shape = 's32[2]{0}', space=sflag, size = 0x8, scoped, tag = 'scoped memory for tpu_custom_call.1']
    #allocation4 [shape = 's32[2]{0}', space=sflag, size = 0x8, scoped, tag = 'scoped memory for tpu_custom_call.1']
    #allocation5 [shape = 'u8[32768]{0}', space=vmem, size = 0x8000, scoped, tag = 'input window, operand 1']
    #allocation6 [shape = 's32[2]{0}', space=sflag, size = 0x8, scoped, tag = 'scoped memory for tpu_custom_call.1']
    #allocation7 [shape = 'u8[32768]{0}', space=vmem, size = 0x8000, scoped, tag = 'output window, operand 0']
    %10 = vsyncpa [#allocation3], 0
    %11 = vsyncpa [#allocation6], 0
    %s12 = scalar_lea.sflag [#allocation6], 1
    %13 = vsyncpa %s12, 0
    %14 = vsyncpa [#allocation4], 0
    %s15 = scalar_lea.sflag [#allocation4], 1
    %16 = vsyncpa %s15, 0
    loop: start=0, step=1, limit=4
    $region2: #{tpu_custom_call.1} parent=1 // loop_pre_header
      _
    $region3: #{tpu_custom_call.1} parent=1 // loop_header
      %s18 = sphi 0, %s22
      %p19 = scmp.ge.s32.totalorder %s18, 4
      %s26 = sphi 0, %s26
      %s28 = sphi 0, %s26
      %s29 = sphi 0, %s28
      %s43 = sphi 0, %s29
      %s49 = sphi 0, %s51
      %s52 = sphi 0, %s49
      %s53 = sphi 0, %s52
      %s69 = sphi 0, %s53
      %s75 = sphi 0, %s77
      %s78 = sphi 0, %s75
      %s79 = sphi 0, %s78
      %s95 = sphi 0, %s79
      %s101 = sphi 0, %s103
      %s104 = sphi 0, %s101
      %s105 = sphi 0, %s104
      %s121 = sphi 0, %s105
      %s127 = sphi 0, %s129
      %s130 = sphi 0, %s127
      %s131 = sphi 0, %s130
      %s147 = sphi 0, %s131
    $region4: #{tpu_custom_call.1} parent=1 // loop_header_branch
      %21 = sbr.rel (%p19) target = $region8
    $region5: #{tpu_custom_call.1} parent=1 // loop_body
      %s23 = ssub.s32 %s18, 1
      %s24 = ssub.s32 %s18, 2
      %s25 = sadd.s32 %s18, 1
      %s27 = sadd.s32 %s26, 1
      %p30 = scmp.eq.s32.totalorder %s18, 1
      %p31 = scmp.ne.s32.totalorder %s26, %s28
      %p32 = scmp.eq.s32.totalorder %s18, 0
      %p33 = por %p31, %p32
      %p34 = scmp.ne.s32.totalorder %s26, %s28
      %p35 = scmp.eq.s32.totalorder %s23, 1
      %p36 = por %p34, %p35
      %p37 = scmp.ne.s32.totalorder %s28, %s29
      %p38 = scmp.eq.s32.totalorder %s23, 0
      %p39 = por %p37, %p38
      %p40 = scmp.ne.s32.totalorder %s28, %s29
      %p41 = scmp.eq.s32.totalorder %s24, 1
      %p42 = por %p40, %p41
      %p44 = scmp.ne.s32.totalorder %s29, %s43
      %p45 = scmp.eq.s32.totalorder %s24, 0
      %p46 = por %p44, %p45
      %s47 = ssub.s32 %s18, %s25
      %p48 = scmp.eq.s32.totalorder %s47, 0
      %s50 = sadd.s32 %s49, 1
      %s51 = scalar_select %p48, %s49, %s50
      %p54 = pneg %p48
      %p55 = scmp.eq.s32.totalorder %s18, 1
      %p56 = por %p54, %p55
      %p57 = scmp.ne.s32.totalorder %s49, %s52
      %p58 = scmp.eq.s32.totalorder %s18, 0
      %p59 = por %p57, %p58
      %p60 = scmp.ne.s32.totalorder %s49, %s52
      %p61 = scmp.eq.s32.totalorder %s23, 1
      %p62 = por %p60, %p61
      %p63 = scmp.ne.s32.totalorder %s52, %s53
      %p64 = scmp.eq.s32.totalorder %s23, 0
      %p65 = por %p63, %p64
      %p66 = scmp.ne.s32.totalorder %s52, %s53
      %p67 = scmp.eq.s32.totalorder %s24, 1
      %p68 = por %p66, %p67
      %p70 = scmp.ne.s32.totalorder %s53, %s69
      %p71 = scmp.eq.s32.totalorder %s24, 0
      %p72 = por %p70, %p71
      %s73 = ssub.s32 %s18, %s25
      %p74 = scmp.eq.s32.totalorder %s73, 0
      %s76 = sadd.s32 %s75, 1
      %s77 = scalar_select %p74, %s75, %s76
      %p80 = pneg %p74
      %p81 = scmp.eq.s32.totalorder %s18, 1
      %p82 = por %p80, %p81
      %p83 = scmp.ne.s32.totalorder %s75, %s78
      %p84 = scmp.eq.s32.totalorder %s18, 0
      %p85 = por %p83, %p84
      %p86 = scmp.ne.s32.totalorder %s75, %s78
      %p87 = scmp.eq.s32.totalorder %s23, 1
      %p88 = por %p86, %p87
      %p89 = scmp.ne.s32.totalorder %s78, %s79
      %p90 = scmp.eq.s32.totalorder %s23, 0
      %p91 = por %p89, %p90
      %p92 = scmp.ne.s32.totalorder %s78, %s79
      %p93 = scmp.eq.s32.totalorder %s24, 1
      %p94 = por %p92, %p93
      %p96 = scmp.ne.s32.totalorder %s79, %s95
      %p97 = scmp.eq.s32.totalorder %s24, 0
      %p98 = por %p96, %p97
      %s99 = ssub.s32 %s18, %s25
      %p100 = scmp.eq.s32.totalorder %s99, 0
      %s102 = sadd.s32 %s101, 1
      %s103 = scalar_select %p100, %s101, %s102
      %p106 = pneg %p100
      %p107 = scmp.eq.s32.totalorder %s18, 1
      %p108 = por %p106, %p107
      %p109 = scmp.ne.s32.totalorder %s101, %s104
      %p110 = scmp.eq.s32.totalorder %s18, 0
      %p111 = por %p109, %p110
      %p112 = scmp.ne.s32.totalorder %s101, %s104
      %p113 = scmp.eq.s32.totalorder %s23, 1
      %p114 = por %p112, %p113
      %p115 = scmp.ne.s32.totalorder %s104, %s105
      %p116 = scmp.eq.s32.totalorder %s23, 0
      %p117 = por %p115, %p116
      %p118 = scmp.ne.s32.totalorder %s104, %s105
      %p119 = scmp.eq.s32.totalorder %s24, 1
      %p120 = por %p118, %p119
      %p122 = scmp.ne.s32.totalorder %s105, %s121
      %p123 = scmp.eq.s32.totalorder %s24, 0
      %p124 = por %p122, %p123
      %s125 = ssub.s32 %s18, %s25
      %p126 = scmp.eq.s32.totalorder %s125, 0
      %s128 = sadd.s32 %s127, 1
      %s129 = scalar_select %p126, %s127, %s128
      %p132 = pneg %p126
      %p133 = scmp.eq.s32.totalorder %s18, 1
      %p134 = por %p132, %p133
      %p135 = scmp.ne.s32.totalorder %s127, %s130
      %p136 = scmp.eq.s32.totalorder %s18, 0
      %p137 = por %p135, %p136
      %p138 = scmp.ne.s32.totalorder %s127, %s130
      %p139 = scmp.eq.s32.totalorder %s23, 1
      %p140 = por %p138, %p139
      %p141 = scmp.ne.s32.totalorder %s130, %s131
      %p142 = scmp.eq.s32.totalorder %s23, 0
      %p143 = por %p141, %p142
      %p144 = scmp.ne.s32.totalorder %s130, %s131
      %p145 = scmp.eq.s32.totalorder %s24, 1
      %p146 = por %p144, %p145
      %p148 = scmp.ne.s32.totalorder %s131, %s147
      %p149 = scmp.eq.s32.totalorder %s24, 0
      %p150 = por %p148, %p149
      %p151 = scmp.le.s32.totalorder 1, %s18
      %p152 = scmp.lt.s32.totalorder %s18, 3
      %p153 = pnand %p151, %p152
      %p154 = pneg %p153
      // Predicated region
      $region9: #{tpu_custom_call.1} parent=5 // pred_check
        _
      $region10: #{tpu_custom_call.1} parent=5 // pred_check_branch
        %156 = sbr.rel (%p153) target = $region12
      $region11: #{tpu_custom_call.1} parent=5 // pred_region
        %s157 = ssub.s32 %s18, 1
        // Predicated region
        $region13: #{tpu_custom_call.1} parent=11 // pred_check
          %p158 = pneg %p39
        $region14: #{tpu_custom_call.1} parent=11 // pred_check_branch
          %160 = sbr.rel (%p158) target = $region16
        $region15: #{tpu_custom_call.1} parent=11 // pred_region
          %s162 = ssub.s32 128, 128
          %163 = vsyncadd [#allocation3], %s162
          %s164 = sshll.u32 [#allocation2], 4
          %s165 = int_to_ptr.vmem [resolvable:$true] %s164
          %170 = dma.hbm_to_vmem [thread:$0]  %s0, 128, %s165, [#allocation3], 64, 64, 4
        $region16: #{tpu_custom_call.1} parent=11 // pred_fallthru
          _
      $region12: #{tpu_custom_call.1} parent=5 // pred_fallthru
        _
      %p171 = scmp.lt.s32.totalorder %s18, 2
      // Predicated region
      $region17: #{tpu_custom_call.1} parent=5 // pred_check
        %p172 = pneg %p171
      $region18: #{tpu_custom_call.1} parent=5 // pred_check_branch
        %174 = sbr.rel (%p172) target = $region20
      $region19: #{tpu_custom_call.1} parent=5 // pred_region
        // Predicated region
        $region21: #{tpu_custom_call.1} parent=19 // pred_check
          %p175 = pneg %p59
        $region22: #{tpu_custom_call.1} parent=19 // pred_check_branch
          %177 = sbr.rel (%p175) target = $region24
        $region23: #{tpu_custom_call.1} parent=19 // pred_region
          %s178 = sand.u32 %s49, 1
          %s179 = scalar_lea.sflag [#allocation6], %s178
          %s180 = sand.u32 %s49, 1
          %s181 = smul.addr %s180, 32
          %s182 = scalar_lea.vmem [#allocation5], %s181
          %s183 = smul.u32 2, %s18
          %s185 = ssub.s32 512, 512
          %186 = vsyncadd %s179, %s185
          %s187 = smul.addr %s183, 64
          %s188 = scalar_lea.hbm %s1, %s187
          %s189 = sshll.u32 %s182, 4
          %s190 = int_to_ptr.vmem [resolvable:$true] %s189
          %195 = dma.hbm_to_vmem [thread:$0]  %s188, 512, %s190, %s179, 256, 128, 8
        $region24: #{tpu_custom_call.1} parent=19 // pred_fallthru
          _
      $region20: #{tpu_custom_call.1} parent=5 // pred_fallthru
        _
      %p196 = scmp.le.s32.totalorder 1, %s18
      %p197 = scmp.lt.s32.totalorder %s18, 3
      %p198 = pnand %p196, %p197
      %p199 = pneg %p198
      // Predicated region
      $region25: #{tpu_custom_call.1} parent=5 // pred_check
        _
      $region26: #{tpu_custom_call.1} parent=5 // pred_check_branch
        %201 = sbr.rel (%p198) target = $region28
      $region27: #{tpu_custom_call.1} parent=5 // pred_region
        %s202 = ssub.s32 %s18, 1
        // Predicated region
        $region29: #{tpu_custom_call.1} parent=27 // pred_check
          %p203 = pneg %p39
        $region30: #{tpu_custom_call.1} parent=27 // pred_check_branch
          %205 = sbr.rel (%p203) target = $region32
        $region31: #{tpu_custom_call.1} parent=27 // pred_region
          %206 = dma.done [#allocation3], 128
        $region32: #{tpu_custom_call.1} parent=27 // pred_fallthru
          _
        %s207 = sand.u32 %s52, 1
        %s208 = scalar_lea.sflag [#allocation6], %s207
        %s209 = sand.u32 %s52, 1
        %s210 = smul.addr %s209, 32
        %s211 = scalar_lea.vmem [#allocation5], %s210
        // Predicated region
        $region33: #{tpu_custom_call.1} parent=27 // pred_check
          %p212 = pneg %p65
        $region34: #{tpu_custom_call.1} parent=27 // pred_check_branch
          %214 = sbr.rel (%p212) target = $region36
        $region35: #{tpu_custom_call.1} parent=27 // pred_region
          %215 = dma.done %s208, 512
        $region36: #{tpu_custom_call.1} parent=27 // pred_fallthru
          _
        %p216 = pneg %p39
        %p217 = pneg %p36
        %s218 = sand.u32 %s52, 1
        %s219 = scalar_lea.sflag [#allocation6], %s218
        %s220 = sand.u32 %s52, 1
        %s221 = smul.addr %s220, 32
        %s222 = scalar_lea.vmem [#allocation5], %s221
        %p223 = pneg %p65
        %p224 = pneg %p62
        %p225 = pneg %p91
        %p226 = pneg %p88
        %s227 = sand.u32 %s78, 1
        %s228 = scalar_lea.sflag [#allocation4], %s227
        %s229 = sand.u32 %s78, 1
        %s230 = smul.addr %s229, 32
        %s231 = scalar_lea.vmem [#allocation7], %s230
        %p232 = pneg %p117
        %p233 = pneg %p114
        %p234 = scmp.lt.s32.totalorder %s23, 1
        %s235 = scalar_select %p234, %s23, 1
        %s236 = smul.addr %s235, 2
        %s237 = smul.addr %s236, 8
        %s238 = scalar_lea.vmem %s3, %s237
        %p239 = pneg %p143
        %p240 = pneg %p140
        %p241 = scmp.lt.s32.totalorder %s23, 1
        %s242 = scalar_select %p241, %s23, 1
        %s243 = smul.addr %s242, 2
        %s244 = smul.addr %s243, 8
        %s245 = scalar_lea.vmem %s4, %s244
        %s246 = smul.u32 2, %s23
        %s247 = smul.u32 2, %s23
        %p248 = scmp.lt.s32.totalorder %s23, 1
        %s249 = scalar_select %p248, %s23, 1
        %s250 = smul.addr %s249, 2
        %s251 = smul.addr %s250, 8
        %s252 = scalar_lea.vmem %s3, %s251
        %p253 = scmp.lt.s32.totalorder %s23, 1
        %s254 = scalar_select %p253, %s23, 1
        %s255 = smul.addr %s254, 2
        %s256 = smul.addr %s255, 8
        %s257 = scalar_lea.vmem %s4, %s256
        %v259 = vld [vmem:[#allocation2] sm:$0xf]
        %v260 = vld [vmem:[#allocation2 + $0x4] sm:$0xf]
        %v261 = vld [vmem:[%s211] sm:$0xff]
        %v262 = vld [vmem:[%s211 + $0x8] sm:$0xff]
        %v263 = vld [vmem:[%s211 + $0x10] sm:$0xff]
        %v264 = vld [vmem:[%s211 + $0x18] sm:$0xff]
        %v267 = vunpack.c.l.b16 %v259
        %v268 = vunpack.c.l.b16 %v260
        %v269 = vpack.c.b16 %v268, %v267
        %v274 = vunpack.c.l.b16 %v261
        %v275 = vunpack.c.h.b16 %v261
        %v276 = vunpack.c.l.b16 %v262
        %v277 = vunpack.c.h.b16 %v262
        %v278 = vunpack.c.l.b16 %v263
        %v279 = vunpack.c.h.b16 %v263
        %v280 = vunpack.c.l.b16 %v264
        %v281 = vunpack.c.h.b16 %v264
        %v282 = vpack.c.b16 %v276, %v274
        %v283 = vpack.c.b16 %v277, %v275
        %v284 = vpack.c.b16 %v280, %v278
        %v285 = vpack.c.b16 %v281, %v279
        %vm290 = vcmask 261120
        %v292 = vsel %vm290, %v269, 0
        %294 = vmatprep.subr.bf16.mxu0 0
        %295 = vmatpush1.bf16.msra.mxu0 0
        %296 = vmatprep.subr.bf16.mxu0 0
        %297 = vmatpush1.bf16.msra.mxu0 0
        %298 = vmatprep.subr.bf16.mxu0 0
        %299 = vmatpush1.bf16.msra.mxu0 0
        %300 = vmatprep.subr.bf16.mxu0 0
        %301 = vmatpush1.bf16.msra.mxu0 0
        %302 = vmatprep.subr.bf16.mxu0 0
        %303 = vmatpush1.bf16.msra.mxu0 0
        %304 = vmatprep.subr.bf16.mxu0 0
        %305 = vmatpush1.bf16.msra.mxu0 0
        %306 = vmatprep.subr.bf16.mxu0 %v285
        %307 = vmatpush1.bf16.msra.mxu0 %v284
        %308 = vmatprep.subr.bf16.mxu0 %v283
        %309 = vmatpush1.bf16.msra.mxu0 %v282
        %310 = vmatprep.subr.bf16.mxu0 0
        %311 = vmatpush2.bf16.msra.mxu0 0
        %312 = vmatprep.subr.bf16.mxu0 0
        %313 = vmatpush2.bf16.msra.mxu0 0
        %314 = vmatprep.subr.bf16.mxu0 0
        %315 = vmatpush2.bf16.msra.mxu0 0
        %316 = vmatprep.subr.bf16.mxu0 0
        %317 = vmatpush2.bf16.msra.mxu0 0
        %318 = vmatprep.subr.bf16.mxu0 0
        %319 = vmatpush2.bf16.msra.mxu0 0
        %320 = vmatprep.subr.bf16.mxu0 0
        %321 = vmatpush2.bf16.msra.mxu0 0
        %322 = vmatprep.subr.bf16.mxu0 0
        %323 = vmatpush2.bf16.msra.mxu0 0
        %324 = vmatprep.subr.bf16.mxu0 0
        %325 = vmatpush2.bf16.msra.mxu0 0
        %326 = vmatprep.mubr.bf16.mxu0 0
        %327 = vmatmul.mubr.bf16.gmra.mxu0 %v292
        %v328 = vpop.f32.mrf.mxu0
        %v329 = vadd.f32 0.0, %v328
        %v330 = vpop.f32.mrf.mxu0
        %v331 = vadd.f32 0.0, %v330
        %v332 = vpop.f32.mrf.mxu0
        %v333 = vadd.f32 0.0, %v332
        %v334 = vpop.f32.mrf.mxu0
        %v335 = vadd.f32 0.0, %v334
        %336 = vdwg.mxu0
        %337 = vst [vmem:[%s231] sm:$0xff] %v329
        %338 = vst [vmem:[%s231 + $0x8] sm:$0xff] %v331
        %339 = vst [vmem:[%s231 + $0x10] sm:$0xff] %v333
        %340 = vst [vmem:[%s231 + $0x18] sm:$0xff] %v335
        %v341 = vadd.f32 %v329, %v331
        %342 = vadd.xlane.f32.xlu0 %v341
        %v343 = vpop.xlane.xlu0 %342
        %v344 = vadd.f32 %v333, %v335
        %345 = vadd.xlane.f32.xlu0 %v344
        %v346 = vpop.xlane.xlu0 %345
        %vm347 = vcmask 7168
        %348 = vst.msk [vmem:[%s252] sm:$0xff] %vm347, %v343
        %349 = vst.msk [vmem:[%s252 + $0x8] sm:$0xff] %vm347, %v346
        %v350 = vmul.f32 %v329, %v329
        %v351 = vmul.f32 %v331, %v331
        %v352 = vmul.f32 %v333, %v333
        %v353 = vmul.f32 %v335, %v335
        %v354 = vadd.f32 %v350, %v351
        %355 = vadd.xlane.f32.xlu0 %v354
        %v356 = vpop.xlane.xlu0 %355
        %v357 = vadd.f32 %v352, %v353
        %358 = vadd.xlane.f32.xlu0 %v357
        %v359 = vpop.xlane.xlu0 %358
        %360 = vst.msk [vmem:[%s257] sm:$0xff] %vm347, %v356
        %361 = vst.msk [vmem:[%s257 + $0x8] sm:$0xff] %vm347, %v359
        %s362 = sand.u32 %s78, 1
        %s363 = scalar_lea.sflag [#allocation4], %s362
        %s364 = sand.u32 %s78, 1
        %s365 = smul.addr %s364, 32
        %s366 = scalar_lea.vmem [#allocation7], %s365
        %p367 = scmp.lt.s32.totalorder %s23, 1
        %s368 = scalar_select %p367, %s23, 1
        %s369 = smul.addr %s368, 2
        %s370 = smul.addr %s369, 8
        %s371 = scalar_lea.vmem %s3, %s370
        %p372 = scmp.lt.s32.totalorder %s23, 1
        %s373 = scalar_select %p372, %s23, 1
        %s374 = smul.addr %s373, 2
        %s375 = smul.addr %s374, 8
        %s376 = scalar_lea.vmem %s4, %s375
        // Predicated region
        $region37: #{tpu_custom_call.1} parent=27 // pred_check
          %p377 = pneg %p88
        $region38: #{tpu_custom_call.1} parent=27 // pred_check_branch
          %379 = sbr.rel (%p377) target = $region40
        $region39: #{tpu_custom_call.1} parent=27 // pred_region
          %s380 = smul.u32 2, %s23
          %s382 = ssub.s32 512, 512
          %383 = vsyncadd %s363, %s382
          %s384 = smul.addr %s380, 128
          %s385 = scalar_lea.hbm %s2, %s384
          %s386 = sshll.u32 %s366, 4
          %s387 = int_to_ptr.vmem [resolvable:$true] %s386
          %392 = dma.vmem_to_hbm [thread:$0]  %s387, 512, %s385, %s363, 256, 512, 16
        $region40: #{tpu_custom_call.1} parent=27 // pred_fallthru
          _
        // Predicated region
        $region41: #{tpu_custom_call.1} parent=27 // pred_check
          %p393 = pneg %p114
        $region42: #{tpu_custom_call.1} parent=27 // pred_check_branch
          %395 = sbr.rel (%p393) target = $region44
        $region43: #{tpu_custom_call.1} parent=27 // pred_region
          _
        $region44: #{tpu_custom_call.1} parent=27 // pred_fallthru
          _
        // Predicated region
        $region45: #{tpu_custom_call.1} parent=27 // pred_check
          %p396 = pneg %p140
        $region46: #{tpu_custom_call.1} parent=27 // pred_check_branch
          %398 = sbr.rel (%p396) target = $region48
        $region47: #{tpu_custom_call.1} parent=27 // pred_region
          _
        $region48: #{tpu_custom_call.1} parent=27 // pred_fallthru
          _
      $region28: #{tpu_custom_call.1} parent=5 // pred_fallthru
        _
      %p399 = scmp.le.s32.totalorder 2, %s18
      // Predicated region
      $region49: #{tpu_custom_call.1} parent=5 // pred_check
        %p400 = pneg %p399
      $region50: #{tpu_custom_call.1} parent=5 // pred_check_branch
        %402 = sbr.rel (%p400) target = $region52
      $region51: #{tpu_custom_call.1} parent=5 // pred_region
        %s403 = ssub.s32 %s18, 2
        // Predicated region
        $region53: #{tpu_custom_call.1} parent=51 // pred_check
          %p404 = pneg %p94
        $region54: #{tpu_custom_call.1} parent=51 // pred_check_branch
          %406 = sbr.rel (%p404) target = $region56
        $region55: #{tpu_custom_call.1} parent=51 // pred_region
          %s407 = sand.u32 %s79, 1
          %s408 = scalar_lea.sflag [#allocation4], %s407
          %s409 = sand.u32 %s79, 1
          %s410 = smul.addr %s409, 32
          %s411 = scalar_lea.vmem [#allocation7], %s410
          %412 = dma.done %s408, 512
        $region56: #{tpu_custom_call.1} parent=51 // pred_fallthru
          _
        // Predicated region
        $region57: #{tpu_custom_call.1} parent=51 // pred_check
          %p413 = pneg %p120
        $region58: #{tpu_custom_call.1} parent=51 // pred_check_branch
          %415 = sbr.rel (%p413) target = $region60
        $region59: #{tpu_custom_call.1} parent=51 // pred_region
          %p416 = scmp.lt.s32.totalorder %s24, 1
          %s417 = scalar_select %p416, %s24, 1
          %s418 = smul.addr %s417, 2
          %s419 = smul.addr %s418, 8
          %s420 = scalar_lea.vmem %s3, %s419
        $region60: #{tpu_custom_call.1} parent=51 // pred_fallthru
          _
        // Predicated region
        $region61: #{tpu_custom_call.1} parent=51 // pred_check
          %p421 = pneg %p146
        $region62: #{tpu_custom_call.1} parent=51 // pred_check_branch
          %423 = sbr.rel (%p421) target = $region64
        $region63: #{tpu_custom_call.1} parent=51 // pred_region
          %p424 = scmp.lt.s32.totalorder %s24, 1
          %s425 = scalar_select %p424, %s24, 1
          %s426 = smul.addr %s425, 2
          %s427 = smul.addr %s426, 8
          %s428 = scalar_lea.vmem %s4, %s427
        $region64: #{tpu_custom_call.1} parent=51 // pred_fallthru
          _
      $region52: #{tpu_custom_call.1} parent=5 // pred_fallthru
        _
    $region6: #{tpu_custom_call.1} parent=1 // loop_footer
      %s22 = sadd.s32 1, %s18
    $region7: #{tpu_custom_call.1} parent=1 // loop_footer_branch
      %17 = sbr.rel target = $region3
    $region8: #{tpu_custom_call.1} parent=1 // loop_exit
      _
    %429 = vsyncpa [#allocation3], 1
    %s430 = scalar_lea.sflag [#allocation3], 1
    %431 = vsyncpa %s430, 1
    %432 = vsyncpa [#allocation6], 1
    %s433 = scalar_lea.sflag [#allocation6], 1
    %434 = vsyncpa %s433, 1
    %435 = vsyncpa [#allocation4], 1
    %s436 = scalar_lea.sflag [#allocation4], 1
    %437 = vsyncpa %s436, 1

</llo_original>
